<compile_context>
chip_gen: v7x
topology: tpu7x:2x2x1
jax: 0.10.0
libtpu: 0.0.40
codegen_flags: <defaults>
</compile_context>

<pallas_src>
import jax
import jax.numpy as jnp
from jax.experimental import pallas as pl
from jax.experimental.pallas import tpu as pltpu

# ---- Model hyperparameters (small, consistent with the module) ----
BATCH = 8
DATA_C, DATA_H, DATA_W = 1, 16, 16
DATA_SIZE = DATA_C * DATA_H * DATA_W       # 256
FULL_CON_SIZE = 128                        # args.full_con_size
Z_DIMS = 32                                # args.z_dims
LAT_PAD = 128                              # lane-dense latent slab (mu|logvar|pad)


def _round_up(n, m):
    return (n + m - 1) // m * m


def vae_fwd_kernel(x_ref,
                   w1_ref, b1_ref,
                   wlat_ref, blat_ref,
                   w3p_ref, b3_ref,
                   w4_ref, b4_ref,
                   recon_ref, lat_ref):
    x = x_ref[...]  # already f32, no cast needed

    # encode: fc1 -> relu          [TB,256] @ [256,128]
    h1 = jnp.dot(x, w1_ref[...], preferred_element_type=jnp.float32) + b1_ref[...]
    h1 = jnp.maximum(h1, 0.0)

    # fused fc21|fc22 (+ zero pad) [TB,128] @ [128,128]
    # lanes 0:32 = mu, 32:64 = logvar, 64:128 = zero padding
    lat = jnp.dot(h1, wlat_ref[...], preferred_element_type=jnp.float32) + blat_ref[...]
    lat_ref[...] = lat

    # reparameterize (eval): z = mu.  w3p has zero rows for the non-mu lanes,
    # so lat @ w3p == mu @ w3 exactly — no in-kernel lane slicing required.
    h3 = jnp.dot(lat, w3p_ref[...], preferred_element_type=jnp.float32) + b3_ref[...]
    h3 = jnp.maximum(h3, 0.0)

    # decode head: fc4 -> sigmoid   [TB,128] @ [128,256]
    logits = jnp.dot(h3, w4_ref[...], preferred_element_type=jnp.float32) + b4_ref[...]
    recon_ref[...] = jax.nn.sigmoid(logits)


def vae_forward(x_nchw, params):
    """x_nchw: [B, C, H, W] float32. Returns (recon [B, DATA_SIZE], mu, logvar)."""
    B = x_nchw.shape[0]
    x_flat = x_nchw.reshape(B, DATA_SIZE)

    (w1, b1, w21, b21, w22, b22, w3, b3, w4, b4) = params

    # --- Fuse fc21/fc22 into one lane-dense [128, 128] weight (zero padded) ---
    wlat = jnp.zeros((FULL_CON_SIZE, LAT_PAD), jnp.float32)
    wlat = wlat.at[:, :Z_DIMS].set(w21).at[:, Z_DIMS:2 * Z_DIMS].set(w22)
    blat = jnp.zeros((1, LAT_PAD), jnp.float32)
    blat = blat.at[:, :Z_DIMS].set(b21).at[:, Z_DIMS:2 * Z_DIMS].set(b22)

    # --- Zero-pad fc3 input dim so decode consumes the latent slab directly ---
    w3p = jnp.zeros((LAT_PAD, FULL_CON_SIZE), jnp.float32)
    w3p = w3p.at[:Z_DIMS, :].set(w3)

    # --- Batch tiling: TB up to 128 rows per grid step, pad ragged batches ---
    TB = 128 if B >= 128 else _round_up(max(B, 1), 8)
    B_pad = _round_up(B, TB)
    if B_pad != B:
        x_flat = jnp.pad(x_flat, ((0, B_pad - B), (0, 0)))

    grid = (B_pad // TB,)

    def row_spec(cols):
        return pl.BlockSpec((TB, cols), lambda i: (i, 0))

    def rep_spec(arr):  # replicated (weights/biases): resident across grid steps
        return pl.BlockSpec(arr.shape, lambda i: (0, 0))

    out_shapes = (
        jax.ShapeDtypeStruct((B_pad, DATA_SIZE), jnp.float32),  # recon
        jax.ShapeDtypeStruct((B_pad, LAT_PAD), jnp.float32),    # mu|logvar slab
    )
    in_specs = [
        row_spec(DATA_SIZE),                 # x tile
        rep_spec(w1), rep_spec(b1),
        rep_spec(wlat), rep_spec(blat),
        rep_spec(w3p), rep_spec(b3),
        rep_spec(w4), rep_spec(b4),
    ]
    out_specs = (
        row_spec(DATA_SIZE),
        row_spec(LAT_PAD),
    )

    recon, lat = pl.pallas_call(
        vae_fwd_kernel,
        out_shape=out_shapes,
        grid_spec=pltpu.PrefetchScalarGridSpec(
            num_scalar_prefetch=0,
            grid=grid,
            in_specs=in_specs,
            out_specs=out_specs,
        ),
        compiler_params=pltpu.CompilerParams(
            # Batch axis is independent -> shards across v7x's 2 TCs when grid >= 2.
            dimension_semantics=("parallel",)),
    )(x_flat, w1, b1, wlat, blat, w3p, b3, w4, b4)

    recon = recon[:B]
    mu = lat[:B, :Z_DIMS]
    logvar = lat[:B, Z_DIMS:2 * Z_DIMS]
    return recon, mu, logvar


def init_params(key):
    """Deterministic parameter init. Weights stored as [in, out] (transposed
    relative to torch.nn.Linear). Biases stored as [1, out] for 2D TPU layout."""
    ks = jax.random.split(key, 10)

    def lin(kw, kb, fan_in, fan_out):
        bound = 1.0 / jnp.sqrt(fan_in)
        w = jax.random.uniform(kw, (fan_in, fan_out), jnp.float32, -bound, bound)
        b = jax.random.uniform(kb, (1, fan_out), jnp.float32, -bound, bound)
        return w, b

    w1, b1 = lin(ks[0], ks[1], DATA_SIZE, FULL_CON_SIZE)
    w21, b21 = lin(ks[2], ks[3], FULL_CON_SIZE, Z_DIMS)
    w22, b22 = lin(ks[4], ks[5], FULL_CON_SIZE, Z_DIMS)
    w3, b3 = lin(ks[6], ks[7], Z_DIMS, FULL_CON_SIZE)
    w4, b4 = lin(ks[8], ks[9], FULL_CON_SIZE, DATA_SIZE)
    return (w1, b1, w21, b21, w22, b22, w3, b3, w4, b4)


def vae_forward_ref(x_nchw, params):
    """Pure-JAX reference for verification (unfused / unpadded weights)."""
    (w1, b1, w21, b21, w22, b22, w3, b3, w4, b4) = params
    x = x_nchw.reshape(x_nchw.shape[0], DATA_SIZE)
    h1 = jnp.maximum(x @ w1 + b1, 0.0)
    mu = h1 @ w21 + b21
    logvar = h1 @ w22 + b22
    z = mu
    h3 = jnp.maximum(z @ w3 + b3, 0.0)
    recon = jax.nn.sigmoid(h3 @ w4 + b4)
    return recon, mu, logvar


if __name__ == "__main__":
    key = jax.random.PRNGKey(0)
    k_x, k_p = jax.random.split(key)

    x = jax.random.uniform(k_x, (BATCH, DATA_C, DATA_H, DATA_W), jnp.float32)
    params = init_params(k_p)

    recon, mu, logvar = vae_forward(x, params)
    jax.block_until_ready((recon, mu, logvar))

    recon_r, mu_r, logvar_r = vae_forward_ref(x, params)
    assert recon.shape == (BATCH, DATA_SIZE)
    assert mu.shape == (BATCH, Z_DIMS) and logvar.shape == (BATCH, Z_DIMS)
    assert jnp.allclose(recon, recon_r, atol=1e-5, rtol=1e-5)
    assert jnp.allclose(mu, mu_r, atol=1e-5, rtol=1e-5)
    assert jnp.allclose(logvar, logvar_r, atol=1e-5, rtol=1e-5)

    print("KERNEL_OK")
</pallas_src>

<mosaic_0001>
module attributes {stable_mosaic.version = 11 : i64} {
  func.func @vae_fwd_kernel(%arg0: i32, %arg1: memref<8x256xf32, #tpu.memory_space<vmem>>, %arg2: memref<256x128xf32, #tpu.memory_space<vmem>>, %arg3: memref<1x128xf32, #tpu.memory_space<vmem>>, %arg4: memref<128x128xf32, #tpu.memory_space<vmem>>, %arg5: memref<1x128xf32, #tpu.memory_space<vmem>>, %arg6: memref<128x128xf32, #tpu.memory_space<vmem>>, %arg7: memref<1x128xf32, #tpu.memory_space<vmem>>, %arg8: memref<128x256xf32, #tpu.memory_space<vmem>>, %arg9: memref<1x256xf32, #tpu.memory_space<vmem>>, %arg10: memref<8x256xf32, #tpu.memory_space<vmem>>, %arg11: memref<8x128xf32, #tpu.memory_space<vmem>>) attributes {dimension_semantics = [#tpu.dimension_semantics<parallel>], iteration_bounds = array<i64: 1>, scalar_prefetch = 0 : i64, scratch_operands = 0 : i64, tpu.core_type = #tpu.core_type<tc>, window_params = [{transform_indices = @transform_0, window_bounds = array<i64: 8, 256>}, {pipeline_mode = #tpu.pipeline_mode<synchronous>, transform_indices = @transform_1, window_bounds = array<i64: 256, 128>}, {pipeline_mode = #tpu.pipeline_mode<synchronous>, transform_indices = @transform_2, window_bounds = array<i64: 1, 128>}, {pipeline_mode = #tpu.pipeline_mode<synchronous>, transform_indices = @transform_3, window_bounds = array<i64: 128, 128>}, {pipeline_mode = #tpu.pipeline_mode<synchronous>, transform_indices = @transform_4, window_bounds = array<i64: 1, 128>}, {pipeline_mode = #tpu.pipeline_mode<synchronous>, transform_indices = @transform_5, window_bounds = array<i64: 128, 128>}, {pipeline_mode = #tpu.pipeline_mode<synchronous>, transform_indices = @transform_6, window_bounds = array<i64: 1, 128>}, {pipeline_mode = #tpu.pipeline_mode<synchronous>, transform_indices = @transform_7, window_bounds = array<i64: 128, 256>}, {pipeline_mode = #tpu.pipeline_mode<synchronous>, transform_indices = @transform_8, window_bounds = array<i64: 1, 256>}, {transform_indices = @transform_9, window_bounds = array<i64: 8, 256>}, {transform_indices = @transform_10, window_bounds = array<i64: 8, 128>}]} {
    %c0 = arith.constant 0 : index
    %c0_0 = arith.constant 0 : index
    %0 = vector.load %arg1[%c0, %c0_0] : memref<8x256xf32, #tpu.memory_space<vmem>>, vector<8x256xf32>
    %c0_1 = arith.constant 0 : index
    %c0_2 = arith.constant 0 : index
    %1 = vector.load %arg2[%c0_1, %c0_2] : memref<256x128xf32, #tpu.memory_space<vmem>>, vector<256x128xf32>
    %cst = arith.constant dense<0.000000e+00> : vector<8x128xf32>
    %2 = tpu.matmul %0, %1, %cst {dimension_numbers = #tpu.dot_dimension_numbers<[1], [0], [0], [1], [0, 0, 1, 1], [], []>} : vector<8x256xf32>, vector<256x128xf32>, vector<8x128xf32> -> vector<8x128xf32>
    %c0_3 = arith.constant 0 : index
    %c0_4 = arith.constant 0 : index
    %3 = vector.load %arg3[%c0_3, %c0_4] : memref<1x128xf32, #tpu.memory_space<vmem>>, vector<1x128xf32>
    %4 = vector.broadcast %3 : vector<1x128xf32> to vector<8x128xf32>
    %5 = arith.addf %2, %4 : vector<8x128xf32>
    %cst_5 = arith.constant 0.000000e+00 : f32
    %6 = vector.broadcast %cst_5 : f32 to vector<8x128xf32>
    %7 = arith.maximumf %5, %6 : vector<8x128xf32>
    %c0_6 = arith.constant 0 : index
    %c0_7 = arith.constant 0 : index
    %8 = vector.load %arg4[%c0_6, %c0_7] : memref<128x128xf32, #tpu.memory_space<vmem>>, vector<128x128xf32>
    %cst_8 = arith.constant dense<0.000000e+00> : vector<8x128xf32>
    %9 = tpu.matmul %7, %8, %cst_8 {dimension_numbers = #tpu.dot_dimension_numbers<[1], [0], [0], [1], [0, 0, 1, 1], [], []>} : vector<8x128xf32>, vector<128x128xf32>, vector<8x128xf32> -> vector<8x128xf32>
    %c0_9 = arith.constant 0 : index
    %c0_10 = arith.constant 0 : index
    %10 = vector.load %arg5[%c0_9, %c0_10] : memref<1x128xf32, #tpu.memory_space<vmem>>, vector<1x128xf32>
    %11 = vector.broadcast %10 : vector<1x128xf32> to vector<8x128xf32>
    %12 = arith.addf %9, %11 : vector<8x128xf32>
    %c0_11 = arith.constant 0 : index
    %c0_12 = arith.constant 0 : index
    %13 = vector.load %arg11[%c0_11, %c0_12] : memref<8x128xf32, #tpu.memory_space<vmem>>, vector<8x128xf32>
    tpu.vector_store %arg11[%c0_11, %c0_12], %12 {strides = array<i32>} : memref<8x128xf32, #tpu.memory_space<vmem>>, vector<8x128xf32>,
    %c0_13 = arith.constant 0 : index
    %c0_14 = arith.constant 0 : index
    %14 = vector.load %arg6[%c0_13, %c0_14] : memref<128x128xf32, #tpu.memory_space<vmem>>, vector<128x128xf32>
    %cst_15 = arith.constant dense<0.000000e+00> : vector<8x128xf32>
    %15 = tpu.matmul %12, %14, %cst_15 {dimension_numbers = #tpu.dot_dimension_numbers<[1], [0], [0], [1], [0, 0, 1, 1], [], []>} : vector<8x128xf32>, vector<128x128xf32>, vector<8x128xf32> -> vector<8x128xf32>
    %c0_16 = arith.constant 0 : index
    %c0_17 = arith.constant 0 : index
    %16 = vector.load %arg7[%c0_16, %c0_17] : memref<1x128xf32, #tpu.memory_space<vmem>>, vector<1x128xf32>
    %17 = vector.broadcast %16 : vector<1x128xf32> to vector<8x128xf32>
    %18 = arith.addf %15, %17 : vector<8x128xf32>
    %cst_18 = arith.constant 0.000000e+00 : f32
    %19 = vector.broadcast %cst_18 : f32 to vector<8x128xf32>
    %20 = arith.maximumf %18, %19 : vector<8x128xf32>
    %c0_19 = arith.constant 0 : index
    %c0_20 = arith.constant 0 : index
    %21 = vector.load %arg8[%c0_19, %c0_20] : memref<128x256xf32, #tpu.memory_space<vmem>>, vector<128x256xf32>
    %cst_21 = arith.constant dense<0.000000e+00> : vector<8x256xf32>
    %22 = tpu.matmul %20, %21, %cst_21 {dimension_numbers = #tpu.dot_dimension_numbers<[1], [0], [0], [1], [0, 0, 1, 1], [], []>} : vector<8x128xf32>, vector<128x256xf32>, vector<8x256xf32> -> vector<8x256xf32>
    %c0_22 = arith.constant 0 : index
    %c0_23 = arith.constant 0 : index
    %23 = vector.load %arg9[%c0_22, %c0_23] : memref<1x256xf32, #tpu.memory_space<vmem>>, vector<1x256xf32>
    %24 = vector.broadcast %23 : vector<1x256xf32> to vector<8x256xf32>
    %25 = arith.addf %22, %24 : vector<8x256xf32>
    %26 = arith.negf %25 : vector<8x256xf32>
    %27 = math.exp %26 : vector<8x256xf32>
    %cst_24 = arith.constant 1.000000e+00 : f32
    %28 = vector.broadcast %cst_24 : f32 to vector<8x256xf32>
    %29 = arith.addf %28, %27 : vector<8x256xf32>
    %30 = arith.divf %28, %29 : vector<8x256xf32>
    %c0_25 = arith.constant 0 : index
    %c0_26 = arith.constant 0 : index
    %31 = vector.load %arg10[%c0_25, %c0_26] : memref<8x256xf32, #tpu.memory_space<vmem>>, vector<8x256xf32>
    tpu.vector_store %arg10[%c0_25, %c0_26], %30 {strides = array<i32>} : memref<8x256xf32, #tpu.memory_space<vmem>>, vector<8x256xf32>,
    return
  }
  func.func @transform_0(%arg0: i32) -> (i32, i32) {
    %c0_i32 = arith.constant 0 : i32
    %c0_i32_0 = arith.constant 0 : i32
    return %arg0, %c0_i32 : i32, i32
  }
  func.func @transform_1(%arg0: i32) -> (i32, i32) {
    %c0_i32 = arith.constant 0 : i32
    %c0_i32_0 = arith.constant 0 : i32
    %c0_i32_1 = arith.constant 0 : i32
    return %c0_i32, %c0_i32_0 : i32, i32
  }
  func.func @transform_2(%arg0: i32) -> (i32, i32) {
    %c0_i32 = arith.constant 0 : i32
    %c0_i32_0 = arith.constant 0 : i32
    %c0_i32_1 = arith.constant 0 : i32
    return %c0_i32, %c0_i32_0 : i32, i32
  }
  func.func @transform_3(%arg0: i32) -> (i32, i32) {
    %c0_i32 = arith.constant 0 : i32
    %c0_i32_0 = arith.constant 0 : i32
    %c0_i32_1 = arith.constant 0 : i32
    return %c0_i32, %c0_i32_0 : i32, i32
  }
  func.func @transform_4(%arg0: i32) -> (i32, i32) {
    %c0_i32 = arith.constant 0 : i32
    %c0_i32_0 = arith.constant 0 : i32
    %c0_i32_1 = arith.constant 0 : i32
    return %c0_i32, %c0_i32_0 : i32, i32
  }
  func.func @transform_5(%arg0: i32) -> (i32, i32) {
    %c0_i32 = arith.constant 0 : i32
    %c0_i32_0 = arith.constant 0 : i32
    %c0_i32_1 = arith.constant 0 : i32
    return %c0_i32, %c0_i32_0 : i32, i32
  }
  func.func @transform_6(%arg0: i32) -> (i32, i32) {
    %c0_i32 = arith.constant 0 : i32
    %c0_i32_0 = arith.constant 0 : i32
    %c0_i32_1 = arith.constant 0 : i32
    return %c0_i32, %c0_i32_0 : i32, i32
  }
  func.func @transform_7(%arg0: i32) -> (i32, i32) {
    %c0_i32 = arith.constant 0 : i32
    %c0_i32_0 = arith.constant 0 : i32
    %c0_i32_1 = arith.constant 0 : i32
    return %c0_i32, %c0_i32_0 : i32, i32
  }
  func.func @transform_8(%arg0: i32) -> (i32, i32) {
    %c0_i32 = arith.constant 0 : i32
    %c0_i32_0 = arith.constant 0 : i32
    %c0_i32_1 = arith.constant 0 : i32
    return %c0_i32, %c0_i32_0 : i32, i32
  }
  func.func @transform_9(%arg0: i32) -> (i32, i32) {
    %c0_i32 = arith.constant 0 : i32
    %c0_i32_0 = arith.constant 0 : i32
    return %arg0, %c0_i32 : i32, i32
  }
  func.func @transform_10(%arg0: i32) -> (i32, i32) {
    %c0_i32 = arith.constant 0 : i32
    %c0_i32_0 = arith.constant 0 : i32
    return %arg0, %c0_i32 : i32, i32
  }
}

</mosaic_0001>

<llo_original>
// kernel: tpu_custom_call.1
$region0: #{tpu_custom_call.1}
  #allocation0 [shape = 'u32[]', space=smem, size = 0x4, offset = 0x4, fixed_abs, tag = 'smem constant byte address 0x4 - core index']
  #allocation1 [shape = 'u32[144,128]{1,0:T(1,128)}', space=vmem, size = 0x12000, scoped, tag = 'internal scratch']
  %s0 = inlined_call_operand.hbm [shape: f32[8,256], index: 0, kind: input, shape index: {}]
  %s1 = inlined_call_operand.hbm [shape: f32[256,128], index: 1, kind: input, shape index: {}]
  %s2 = inlined_call_operand.vmem [shape: f32[1,128], index: 2, kind: input, shape index: {}]
  %s3 = inlined_call_operand.hbm [shape: f32[128,128], index: 3, kind: input, shape index: {}]
  %s4 = inlined_call_operand.vmem [shape: f32[1,128], index: 4, kind: input, shape index: {}]
  %s5 = inlined_call_operand.hbm [shape: f32[128,128], index: 5, kind: input, shape index: {}]
  %s6 = inlined_call_operand.vmem [shape: f32[1,128], index: 6, kind: input, shape index: {}]
  %s7 = inlined_call_operand.hbm [shape: f32[128,256], index: 7, kind: input, shape index: {}]
  %s8 = inlined_call_operand.vmem [shape: f32[1,256], index: 8, kind: input, shape index: {}]
  %s9 = inlined_call_operand.hbm [shape: f32[8,256], index: 9, kind: output, shape index: {0}]
  %s10 = inlined_call_operand.hbm [shape: f32[8,128], index: 10, kind: output, shape index: {1}]
  %11 = xla_tuple %s9, %s10
  %s12 = sld [smem:[#allocation0]]
  $region74: #{tpu_custom_call.1} parent=0
    _
  %s14 = ssub.s32 1, %s12
  %s15 = scalar_select 0, %s14, %s12
  $region1: #{tpu_custom_call.1} parent=0
    #allocation2 [shape = 'u8[8192]{0}', space=vmem, size = 0x2000, scoped, tag = 'input window, operand 0, single buffered']
    #allocation3 [shape = 's32[1]{0}', space=sflag, size = 0x4, scoped, tag = 'scoped memory for tpu_custom_call.1']
    #allocation4 [shape = 's32[1]{0}', space=sflag, size = 0x4, scoped, tag = 'scoped memory for tpu_custom_call.1']
    #allocation5 [shape = 'u8[131072]{0}', space=vmem, size = 0x20000, scoped, tag = 'input window, operand 1, single buffered']
    #allocation6 [shape = 's32[1]{0}', space=sflag, size = 0x4, scoped, tag = 'scoped memory for tpu_custom_call.1']
    #allocation7 [shape = 'u8[65536]{0}', space=vmem, size = 0x10000, scoped, tag = 'input window, operand 3, single buffered']
    #allocation8 [shape = 'u8[65536]{0}', space=vmem, size = 0x10000, scoped, tag = 'input window, operand 5, single buffered']
    #allocation9 [shape = 's32[1]{0}', space=sflag, size = 0x4, scoped, tag = 'scoped memory for tpu_custom_call.1']
    #allocation10 [shape = 'u8[131072]{0}', space=vmem, size = 0x20000, scoped, tag = 'input window, operand 7, single buffered']
    #allocation11 [shape = 'u8[8192]{0}', space=vmem, size = 0x2000, scoped, tag = 'output window, operand 0, single buffered']
    #allocation12 [shape = 'u8[4096]{0}', space=vmem, size = 0x1000, scoped, tag = 'output window, operand 1, single buffered']
    #allocation13 [shape = 's32[1]{0}', space=sflag, size = 0x4, scoped, tag = 'scoped memory for tpu_custom_call.1']
    %16 = vsyncpa [#allocation3], 0
    %17 = vsyncpa [#allocation6], 0
    %18 = vsyncpa [#allocation9], 0
    %19 = vsyncpa [#allocation4], 0
    %20 = vsyncpa [#allocation13], 0
    // Predicated region
    $region2: #{tpu_custom_call.1} parent=1 // pred_check
      _
    $region3: #{tpu_custom_call.1} parent=1 // pred_check_branch
      %22 = sbr.rel (0) target = $region5
    $region4: #{tpu_custom_call.1} parent=1 // pred_region
      %s24 = ssub.s32 256, 256
      %25 = vsyncadd [#allocation3], %s24
      %s27 = sshll.u32 [#allocation2], 4
      %s28 = int_to_ptr.vmem [resolvable:$true] %s27
      %30 = dma.hbm_to_vmem [thread:$0]  %s0, 256, %s28, [#allocation3]
    $region5: #{tpu_custom_call.1} parent=1 // pred_fallthru
      _
    // Predicated region
    $region6: #{tpu_custom_call.1} parent=1 // pred_check
      _
    $region7: #{tpu_custom_call.1} parent=1 // pred_check_branch
      %32 = sbr.rel (0) target = $region9
    $region8: #{tpu_custom_call.1} parent=1 // pred_region
      %s34 = ssub.s32 4096, 4096
      %35 = vsyncadd [#allocation6], %s34
      %s36 = sshll.u32 [#allocation5], 4
      %s37 = int_to_ptr.vmem [resolvable:$true] %s36
      %42 = dma.hbm_to_vmem [thread:$0]  %s1, 4096, %s37, [#allocation6], 128, 128, 8
    $region9: #{tpu_custom_call.1} parent=1 // pred_fallthru
      _
    // Predicated region
    $region10: #{tpu_custom_call.1} parent=1 // pred_check
      _
    $region11: #{tpu_custom_call.1} parent=1 // pred_check_branch
      %44 = sbr.rel (0) target = $region13
    $region12: #{tpu_custom_call.1} parent=1 // pred_region
      _
    $region13: #{tpu_custom_call.1} parent=1 // pred_fallthru
      _
    // Predicated region
    $region14: #{tpu_custom_call.1} parent=1 // pred_check
      _
    $region15: #{tpu_custom_call.1} parent=1 // pred_check_branch
      %46 = sbr.rel (0) target = $region17
    $region16: #{tpu_custom_call.1} parent=1 // pred_region
      %s48 = ssub.s32 2048, 2048
      %49 = vsyncadd [#allocation6], %s48
      %s50 = sshll.u32 [#allocation7], 4
      %s51 = int_to_ptr.vmem [resolvable:$true] %s50
      %56 = dma.hbm_to_vmem [thread:$0]  %s3, 2048, %s51, [#allocation6], 128, 128, 8
    $region17: #{tpu_custom_call.1} parent=1 // pred_fallthru
      _
    // Predicated region
    $region18: #{tpu_custom_call.1} parent=1 // pred_check
      _
    $region19: #{tpu_custom_call.1} parent=1 // pred_check_branch
      %58 = sbr.rel (0) target = $region21
    $region20: #{tpu_custom_call.1} parent=1 // pred_region
      _
    $region21: #{tpu_custom_call.1} parent=1 // pred_fallthru
      _
    // Predicated region
    $region22: #{tpu_custom_call.1} parent=1 // pred_check
      _
    $region23: #{tpu_custom_call.1} parent=1 // pred_check_branch
      %60 = sbr.rel (0) target = $region25
    $region24: #{tpu_custom_call.1} parent=1 // pred_region
      %s62 = ssub.s32 2048, 2048
      %63 = vsyncadd [#allocation9], %s62
      %s64 = sshll.u32 [#allocation8], 4
      %s65 = int_to_ptr.vmem [resolvable:$true] %s64
      %70 = dma.hbm_to_vmem [thread:$0]  %s5, 2048, %s65, [#allocation9], 128, 128, 8
    $region25: #{tpu_custom_call.1} parent=1 // pred_fallthru
      _
    // Predicated region
    $region26: #{tpu_custom_call.1} parent=1 // pred_check
      _
    $region27: #{tpu_custom_call.1} parent=1 // pred_check_branch
      %72 = sbr.rel (0) target = $region29
    $region28: #{tpu_custom_call.1} parent=1 // pred_region
      _
    $region29: #{tpu_custom_call.1} parent=1 // pred_fallthru
      _
    // Predicated region
    $region30: #{tpu_custom_call.1} parent=1 // pred_check
      _
    $region31: #{tpu_custom_call.1} parent=1 // pred_check_branch
      %74 = sbr.rel (0) target = $region33
    $region32: #{tpu_custom_call.1} parent=1 // pred_region
      %s76 = ssub.s32 4096, 4096
      %77 = vsyncadd [#allocation9], %s76
      %s78 = sshll.u32 [#allocation10], 4
      %s79 = int_to_ptr.vmem [resolvable:$true] %s78
      %84 = dma.hbm_to_vmem [thread:$0]  %s7, 4096, %s79, [#allocation9], 256, 256, 16
    $region33: #{tpu_custom_call.1} parent=1 // pred_fallthru
      _
    // Predicated region
    $region34: #{tpu_custom_call.1} parent=1 // pred_check
      _
    $region35: #{tpu_custom_call.1} parent=1 // pred_check_branch
      %86 = sbr.rel (0) target = $region37
    $region36: #{tpu_custom_call.1} parent=1 // pred_region
      _
    $region37: #{tpu_custom_call.1} parent=1 // pred_fallthru
      _
    // Predicated region
    $region38: #{tpu_custom_call.1} parent=1 // pred_check
      _
    $region39: #{tpu_custom_call.1} parent=1 // pred_check_branch
      %88 = sbr.rel (0) target = $region41
    $region40: #{tpu_custom_call.1} parent=1 // pred_region
      %89 = dma.done [#allocation3], 256
    $region41: #{tpu_custom_call.1} parent=1 // pred_fallthru
      _
    // Predicated region
    $region42: #{tpu_custom_call.1} parent=1 // pred_check
      _
    $region43: #{tpu_custom_call.1} parent=1 // pred_check_branch
      %91 = sbr.rel (0) target = $region45
    $region44: #{tpu_custom_call.1} parent=1 // pred_region
      %92 = dma.done [#allocation6], 4096
    $region45: #{tpu_custom_call.1} parent=1 // pred_fallthru
      _
    // Predicated region
    $region46: #{tpu_custom_call.1} parent=1 // pred_check
      _
    $region47: #{tpu_custom_call.1} parent=1 // pred_check_branch
      %94 = sbr.rel (0) target = $region49
    $region48: #{tpu_custom_call.1} parent=1 // pred_region
      %95 = dma.done [#allocation6], 2048
    $region49: #{tpu_custom_call.1} parent=1 // pred_fallthru
      _
    // Predicated region
    $region50: #{tpu_custom_call.1} parent=1 // pred_check
      _
    $region51: #{tpu_custom_call.1} parent=1 // pred_check_branch
      %97 = sbr.rel (0) target = $region53
    $region52: #{tpu_custom_call.1} parent=1 // pred_region
      %98 = dma.done [#allocation9], 2048
    $region53: #{tpu_custom_call.1} parent=1 // pred_fallthru
      _
    // Predicated region
    $region54: #{tpu_custom_call.1} parent=1 // pred_check
      _
    $region55: #{tpu_custom_call.1} parent=1 // pred_check_branch
      %100 = sbr.rel (0) target = $region57
    $region56: #{tpu_custom_call.1} parent=1 // pred_region
      %101 = dma.done [#allocation9], 4096
    $region57: #{tpu_custom_call.1} parent=1 // pred_fallthru
      _
    %v102 = vld [vmem:[#allocation2] sm:$0xff]
    %v103 = vld [vmem:[#allocation2 + $0x8] sm:$0xff]
    %v104 = vld [vmem:[#allocation5] sm:$0xff]
    %v105 = vld [vmem:[#allocation5 + $0x8] sm:$0xff]
    %v106 = vld [vmem:[#allocation5 + $0x10] sm:$0xff]
    %v107 = vld [vmem:[#allocation5 + $0x18] sm:$0xff]
    %v108 = vld [vmem:[#allocation5 + $0x20] sm:$0xff]
    %v109 = vld [vmem:[#allocation5 + $0x28] sm:$0xff]
    %v110 = vld [vmem:[#allocation5 + $0x30] sm:$0xff]
    %v111 = vld [vmem:[#allocation5 + $0x38] sm:$0xff]
    %v112 = vld [vmem:[#allocation5 + $0x40] sm:$0xff]
    %v113 = vld [vmem:[#allocation5 + $0x48] sm:$0xff]
    %v114 = vld [vmem:[#allocation5 + $0x50] sm:$0xff]
    %v115 = vld [vmem:[#allocation5 + $0x58] sm:$0xff]
    %v116 = vld [vmem:[#allocation5 + $0x60] sm:$0xff]
    %v117 = vld [vmem:[#allocation5 + $0x68] sm:$0xff]
    %v118 = vld [vmem:[#allocation5 + $0x70] sm:$0xff]
    %v119 = vld [vmem:[#allocation5 + $0x78] sm:$0xff]
    %v120 = vld [vmem:[#allocation5 + $0x80] sm:$0xff]
    %v121 = vld [vmem:[#allocation5 + $0x88] sm:$0xff]
    %v122 = vld [vmem:[#allocation5 + $0x90] sm:$0xff]
    %v123 = vld [vmem:[#allocation5 + $0x98] sm:$0xff]
    %v124 = vld [vmem:[#allocation5 + $0xa0] sm:$0xff]
    %v125 = vld [vmem:[#allocation5 + $0xa8] sm:$0xff]
    %v126 = vld [vmem:[#allocation5 + $0xb0] sm:$0xff]
    %v127 = vld [vmem:[#allocation5 + $0xb8] sm:$0xff]
    %v128 = vld [vmem:[#allocation5 + $0xc0] sm:$0xff]
    %v129 = vld [vmem:[#allocation5 + $0xc8] sm:$0xff]
    %v130 = vld [vmem:[#allocation5 + $0xd0] sm:$0xff]
    %v131 = vld [vmem:[#allocation5 + $0xd8] sm:$0xff]
    %v132 = vld [vmem:[#allocation5 + $0xe0] sm:$0xff]
    %v133 = vld [vmem:[#allocation5 + $0xe8] sm:$0xff]
    %v134 = vld [vmem:[#allocation5 + $0xf0] sm:$0xff]
    %v135 = vld [vmem:[#allocation5 + $0xf8] sm:$0xff]
    %v136 = vld [vmem:[%s2] sm:$0x1]
    %v138 = vlaneseq
    %v139 = vshrl.u32 %v138, 7
    %v140 = vsub.s32 0, %v139
    %v141 = vrot.slane %v136, %v140
    %143 = vmatprep.subr.mxu0 0.0
    %144 = vmatpush1.msra.mxu0 %v104
    %145 = vmatprep.subr.mxu0 0.0
    %146 = vmatpush1.msra.mxu0 %v105
    %147 = vmatprep.subr.mxu0 0.0
    %148 = vmatpush1.msra.mxu0 %v106
    %149 = vmatprep.subr.mxu0 0.0
    %150 = vmatpush1.msra.mxu0 %v107
    %151 = vmatprep.subr.mxu0 0.0
    %152 = vmatpush1.msra.mxu0 %v108
    %153 = vmatprep.subr.mxu0 0.0
    %154 = vmatpush1.msra.mxu0 %v109
    %155 = vmatprep.subr.mxu0 0.0
    %156 = vmatpush1.msra.mxu0 %v110
    %157 = vmatprep.subr.mxu0 0.0
    %158 = vmatpush1.msra.mxu0 %v111
    %159 = vmatprep.subr.mxu0 0.0
    %160 = vmatpush1.msra.mxu0 %v112
    %161 = vmatprep.subr.mxu0 0.0
    %162 = vmatpush1.msra.mxu0 %v113
    %163 = vmatprep.subr.mxu0 0.0
    %164 = vmatpush1.msra.mxu0 %v114
    %165 = vmatprep.subr.mxu0 0.0
    %166 = vmatpush1.msra.mxu0 %v115
    %167 = vmatprep.subr.mxu0 0.0
    %168 = vmatpush1.msra.mxu0 %v116
    %169 = vmatprep.subr.mxu0 0.0
    %170 = vmatpush1.msra.mxu0 %v117
    %171 = vmatprep.subr.mxu0 0.0
    %172 = vmatpush1.msra.mxu0 %v118
    %173 = vmatprep.subr.mxu0 0.0
    %174 = vmatpush1.msra.mxu0 %v119
    %175 = vmatprep.subr.mxu0 0.0
    %176 = vmatpush1.msra.mxu0 %v120
    %177 = vmatprep.subr.mxu0 0.0
    %178 = vmatpush1.msra.mxu0 %v121
    %179 = vmatprep.subr.mxu0 0.0
    %180 = vmatpush1.msra.mxu0 %v122
    %181 = vmatprep.subr.mxu0 0.0
    %182 = vmatpush1.msra.mxu0 %v123
    %183 = vmatprep.subr.mxu0 0.0
    %184 = vmatpush1.msra.mxu0 %v124
    %185 = vmatprep.subr.mxu0 0.0
    %186 = vmatpush1.msra.mxu0 %v125
    %187 = vmatprep.subr.mxu0 0.0
    %188 = vmatpush1.msra.mxu0 %v126
    %189 = vmatprep.subr.mxu0 0.0
    %190 = vmatpush1.msra.mxu0 %v127
    %191 = vmatprep.subr.mxu0 0.0
    %192 = vmatpush1.msra.mxu0 %v128
    %193 = vmatprep.subr.mxu0 0.0
    %194 = vmatpush1.msra.mxu0 %v129
    %195 = vmatprep.subr.mxu0 0.0
    %196 = vmatpush1.msra.mxu0 %v130
    %197 = vmatprep.subr.mxu0 0.0
    %198 = vmatpush1.msra.mxu0 %v131
    %199 = vmatprep.subr.mxu0 0.0
    %200 = vmatpush1.msra.mxu0 %v132
    %201 = vmatprep.subr.mxu0 0.0
    %202 = vmatpush1.msra.mxu0 %v133
    %203 = vmatprep.subr.mxu0 0.0
    %204 = vmatpush1.msra.mxu0 %v134
    %205 = vmatprep.subr.mxu0 0.0
    %206 = vmatpush1.msra.mxu0 %v135
    %207 = vmatprep.mubr.f32.mxu0 %v103
    %208 = vmatmul.mubr.f32.gmra.mrb[0].mxu0 %v102
    %v209 = vpop.f32.mrb[0].mxu0
    %v210 = vadd.f32 %v141, %v209
    %v211 = vpop.f32.mrb[0].mxu0
    %212 = vdwg.mxu0
    %v213 = vmax.f32 %v210, 0.0
    %v214 = vld [vmem:[#allocation7] sm:$0xff]
    %v215 = vld [vmem:[#allocation7 + $0x8] sm:$0xff]
    %v216 = vld [vmem:[#allocation7 + $0x10] sm:$0xff]
    %v217 = vld [vmem:[#allocation7 + $0x18] sm:$0xff]
    %v218 = vld [vmem:[#allocation7 + $0x20] sm:$0xff]
    %v219 = vld [vmem:[#allocation7 + $0x28] sm:$0xff]
    %v220 = vld [vmem:[#allocation7 + $0x30] sm:$0xff]
    %v221 = vld [vmem:[#allocation7 + $0x38] sm:$0xff]
    %v222 = vld [vmem:[#allocation7 + $0x40] sm:$0xff]
    %v223 = vld [vmem:[#allocation7 + $0x48] sm:$0xff]
    %v224 = vld [vmem:[#allocation7 + $0x50] sm:$0xff]
    %v225 = vld [vmem:[#allocation7 + $0x58] sm:$0xff]
    %v226 = vld [vmem:[#allocation7 + $0x60] sm:$0xff]
    %v227 = vld [vmem:[#allocation7 + $0x68] sm:$0xff]
    %v228 = vld [vmem:[#allocation7 + $0x70] sm:$0xff]
    %v229 = vld [vmem:[#allocation7 + $0x78] sm:$0xff]
    %v230 = vld [vmem:[%s4] sm:$0x1]
    %v232 = vlaneseq
    %v233 = vshrl.u32 %v232, 7
    %v234 = vsub.s32 0, %v233
    %v235 = vrot.slane %v230, %v234
    %237 = vmatprep.subr.mxu0 0.0
    %238 = vmatpush1.msra.mxu0 %v214
    %239 = vmatprep.subr.mxu0 0.0
    %240 = vmatpush1.msra.mxu0 %v215
    %241 = vmatprep.subr.mxu0 0.0
    %242 = vmatpush1.msra.mxu0 %v216
    %243 = vmatprep.subr.mxu0 0.0
    %244 = vmatpush1.msra.mxu0 %v217
    %245 = vmatprep.subr.mxu0 0.0
    %246 = vmatpush1.msra.mxu0 %v218
    %247 = vmatprep.subr.mxu0 0.0
    %248 = vmatpush1.msra.mxu0 %v219
    %249 = vmatprep.subr.mxu0 0.0
    %250 = vmatpush1.msra.mxu0 %v220
    %251 = vmatprep.subr.mxu0 0.0
    %252 = vmatpush1.msra.mxu0 %v221
    %253 = vmatprep.subr.mxu0 0.0
    %254 = vmatpush1.msra.mxu0 %v222
    %255 = vmatprep.subr.mxu0 0.0
    %256 = vmatpush1.msra.mxu0 %v223
    %257 = vmatprep.subr.mxu0 0.0
    %258 = vmatpush1.msra.mxu0 %v224
    %259 = vmatprep.subr.mxu0 0.0
    %260 = vmatpush1.msra.mxu0 %v225
    %261 = vmatprep.subr.mxu0 0.0
    %262 = vmatpush1.msra.mxu0 %v226
    %263 = vmatprep.subr.mxu0 0.0
    %264 = vmatpush1.msra.mxu0 %v227
    %265 = vmatprep.subr.mxu0 0.0
    %266 = vmatpush1.msra.mxu0 %v228
    %267 = vmatprep.subr.mxu0 0.0
    %268 = vmatpush1.msra.mxu0 %v229
    %269 = vmatprep.subr.mxu0 0.0
    %270 = vmatpush1.msra.mxu0 0.0
    %271 = vmatprep.subr.mxu0 0.0
    %272 = vmatpush1.msra.mxu0 0.0
    %273 = vmatprep.subr.mxu0 0.0
    %274 = vmatpush1.msra.mxu0 0.0
    %275 = vmatprep.subr.mxu0 0.0
    %276 = vmatpush1.msra.mxu0 0.0
    %277 = vmatprep.subr.mxu0 0.0
    %278 = vmatpush1.msra.mxu0 0.0
    %279 = vmatprep.subr.mxu0 0.0
    %280 = vmatpush1.msra.mxu0 0.0
    %281 = vmatprep.subr.mxu0 0.0
    %282 = vmatpush1.msra.mxu0 0.0
    %283 = vmatprep.subr.mxu0 0.0
    %284 = vmatpush1.msra.mxu0 0.0
    %285 = vmatprep.subr.mxu0 0.0
    %286 = vmatpush1.msra.mxu0 0.0
    %287 = vmatprep.subr.mxu0 0.0
    %288 = vmatpush1.msra.mxu0 0.0
    %289 = vmatprep.subr.mxu0 0.0
    %290 = vmatpush1.msra.mxu0 0.0
    %291 = vmatprep.subr.mxu0 0.0
    %292 = vmatpush1.msra.mxu0 0.0
    %293 = vmatprep.subr.mxu0 0.0
    %294 = vmatpush1.msra.mxu0 0.0
    %295 = vmatprep.subr.mxu0 0.0
    %296 = vmatpush1.msra.mxu0 0.0
    %297 = vmatprep.subr.mxu0 0.0
    %298 = vmatpush1.msra.mxu0 0.0
    %299 = vmatprep.subr.mxu0 0.0
    %300 = vmatpush1.msra.mxu0 0.0
    %301 = vmatprep.mubr.f32.mxu0 0.0
    %302 = vmatmul.mubr.f32.gmra.mrb[0].mxu0 %v213
    %v303 = vpop.f32.mrb[0].mxu0
    %v304 = vadd.f32 %v235, %v303
    %v305 = vpop.f32.mrb[0].mxu0
    %306 = vdwg.mxu0
    %307 = vst [vmem:[#allocation12] sm:$0xff] %v304
    %v308 = vld [vmem:[#allocation8] sm:$0xff]
    %v309 = vld [vmem:[#allocation8 + $0x8] sm:$0xff]
    %v310 = vld [vmem:[#allocation8 + $0x10] sm:$0xff]
    %v311 = vld [vmem:[#allocation8 + $0x18] sm:$0xff]
    %v312 = vld [vmem:[#allocation8 + $0x20] sm:$0xff]
    %v313 = vld [vmem:[#allocation8 + $0x28] sm:$0xff]
    %v314 = vld [vmem:[#allocation8 + $0x30] sm:$0xff]
    %v315 = vld [vmem:[#allocation8 + $0x38] sm:$0xff]
    %v316 = vld [vmem:[#allocation8 + $0x40] sm:$0xff]
    %v317 = vld [vmem:[#allocation8 + $0x48] sm:$0xff]
    %v318 = vld [vmem:[#allocation8 + $0x50] sm:$0xff]
    %v319 = vld [vmem:[#allocation8 + $0x58] sm:$0xff]
    %v320 = vld [vmem:[#allocation8 + $0x60] sm:$0xff]
    %v321 = vld [vmem:[#allocation8 + $0x68] sm:$0xff]
    %v322 = vld [vmem:[#allocation8 + $0x70] sm:$0xff]
    %v323 = vld [vmem:[#allocation8 + $0x78] sm:$0xff]
    %v324 = vld [vmem:[%s6] sm:$0x1]
    %v326 = vlaneseq
    %v327 = vshrl.u32 %v326, 7
    %v328 = vsub.s32 0, %v327
    %v329 = vrot.slane %v324, %v328
    %331 = vmatprep.subr.mxu0 0.0
    %332 = vmatpush1.msra.mxu0 %v308
    %333 = vmatprep.subr.mxu0 0.0
    %334 = vmatpush1.msra.mxu0 %v309
    %335 = vmatprep.subr.mxu0 0.0
    %336 = vmatpush1.msra.mxu0 %v310
    %337 = vmatprep.subr.mxu0 0.0
    %338 = vmatpush1.msra.mxu0 %v311
    %339 = vmatprep.subr.mxu0 0.0
    %340 = vmatpush1.msra.mxu0 %v312
    %341 = vmatprep.subr.mxu0 0.0
    %342 = vmatpush1.msra.mxu0 %v313
    %343 = vmatprep.subr.mxu0 0.0
    %344 = vmatpush1.msra.mxu0 %v314
    %345 = vmatprep.subr.mxu0 0.0
    %346 = vmatpush1.msra.mxu0 %v315
    %347 = vmatprep.subr.mxu0 0.0
    %348 = vmatpush1.msra.mxu0 %v316
    %349 = vmatprep.subr.mxu0 0.0
    %350 = vmatpush1.msra.mxu0 %v317
    %351 = vmatprep.subr.mxu0 0.0
    %352 = vmatpush1.msra.mxu0 %v318
    %353 = vmatprep.subr.mxu0 0.0
    %354 = vmatpush1.msra.mxu0 %v319
    %355 = vmatprep.subr.mxu0 0.0
    %356 = vmatpush1.msra.mxu0 %v320
    %357 = vmatprep.subr.mxu0 0.0
    %358 = vmatpush1.msra.mxu0 %v321
    %359 = vmatprep.subr.mxu0 0.0
    %360 = vmatpush1.msra.mxu0 %v322
    %361 = vmatprep.subr.mxu0 0.0
    %362 = vmatpush1.msra.mxu0 %v323
    %363 = vmatprep.subr.mxu0 0.0
    %364 = vmatpush1.msra.mxu0 0.0
    %365 = vmatprep.subr.mxu0 0.0
    %366 = vmatpush1.msra.mxu0 0.0
    %367 = vmatprep.subr.mxu0 0.0
    %368 = vmatpush1.msra.mxu0 0.0
    %369 = vmatprep.subr.mxu0 0.0
    %370 = vmatpush1.msra.mxu0 0.0
    %371 = vmatprep.subr.mxu0 0.0
    %372 = vmatpush1.msra.mxu0 0.0
    %373 = vmatprep.subr.mxu0 0.0
    %374 = vmatpush1.msra.mxu0 0.0
    %375 = vmatprep.subr.mxu0 0.0
    %376 = vmatpush1.msra.mxu0 0.0
    %377 = vmatprep.subr.mxu0 0.0
    %378 = vmatpush1.msra.mxu0 0.0
    %379 = vmatprep.subr.mxu0 0.0
    %380 = vmatpush1.msra.mxu0 0.0
    %381 = vmatprep.subr.mxu0 0.0
    %382 = vmatpush1.msra.mxu0 0.0
    %383 = vmatprep.subr.mxu0 0.0
    %384 = vmatpush1.msra.mxu0 0.0
    %385 = vmatprep.subr.mxu0 0.0
    %386 = vmatpush1.msra.mxu0 0.0
    %387 = vmatprep.subr.mxu0 0.0
    %388 = vmatpush1.msra.mxu0 0.0
    %389 = vmatprep.subr.mxu0 0.0
    %390 = vmatpush1.msra.mxu0 0.0
    %391 = vmatprep.subr.mxu0 0.0
    %392 = vmatpush1.msra.mxu0 0.0
    %393 = vmatprep.subr.mxu0 0.0
    %394 = vmatpush1.msra.mxu0 0.0
    %395 = vmatprep.mubr.f32.mxu0 0.0
    %396 = vmatmul.mubr.f32.gmra.mrb[0].mxu0 %v304
    %v397 = vpop.f32.mrb[0].mxu0
    %v398 = vadd.f32 %v329, %v397
    %v399 = vpop.f32.mrb[0].mxu0
    %400 = vdwg.mxu0
    %v401 = vmax.f32 %v398, 0.0
    %v402 = vld [vmem:[#allocation10] sm:$0xff]
    %v403 = vld [vmem:[#allocation10 + $0x8] sm:$0xff]
    %v404 = vld [vmem:[#allocation10 + $0x10] sm:$0xff]
    %v405 = vld [vmem:[#allocation10 + $0x18] sm:$0xff]
    %v406 = vld [vmem:[#allocation10 + $0x20] sm:$0xff]
    %v407 = vld [vmem:[#allocation10 + $0x28] sm:$0xff]
    %v408 = vld [vmem:[#allocation10 + $0x30] sm:$0xff]
    %v409 = vld [vmem:[#allocation10 + $0x38] sm:$0xff]
    %v410 = vld [vmem:[#allocation10 + $0x40] sm:$0xff]
    %v411 = vld [vmem:[#allocation10 + $0x48] sm:$0xff]
    %v412 = vld [vmem:[#allocation10 + $0x50] sm:$0xff]
    %v413 = vld [vmem:[#allocation10 + $0x58] sm:$0xff]
    %v414 = vld [vmem:[#allocation10 + $0x60] sm:$0xff]
    %v415 = vld [vmem:[#allocation10 + $0x68] sm:$0xff]
    %v416 = vld [vmem:[#allocation10 + $0x70] sm:$0xff]
    %v417 = vld [vmem:[#allocation10 + $0x78] sm:$0xff]
    %v418 = vld [vmem:[#allocation10 + $0x80] sm:$0xff]
    %v419 = vld [vmem:[#allocation10 + $0x88] sm:$0xff]
    %v420 = vld [vmem:[#allocation10 + $0x90] sm:$0xff]
    %v421 = vld [vmem:[#allocation10 + $0x98] sm:$0xff]
    %v422 = vld [vmem:[#allocation10 + $0xa0] sm:$0xff]
    %v423 = vld [vmem:[#allocation10 + $0xa8] sm:$0xff]
    %v424 = vld [vmem:[#allocation10 + $0xb0] sm:$0xff]
    %v425 = vld [vmem:[#allocation10 + $0xb8] sm:$0xff]
    %v426 = vld [vmem:[#allocation10 + $0xc0] sm:$0xff]
    %v427 = vld [vmem:[#allocation10 + $0xc8] sm:$0xff]
    %v428 = vld [vmem:[#allocation10 + $0xd0] sm:$0xff]
    %v429 = vld [vmem:[#allocation10 + $0xd8] sm:$0xff]
    %v430 = vld [vmem:[#allocation10 + $0xe0] sm:$0xff]
    %v431 = vld [vmem:[#allocation10 + $0xe8] sm:$0xff]
    %v432 = vld [vmem:[#allocation10 + $0xf0] sm:$0xff]
    %v433 = vld [vmem:[#allocation10 + $0xf8] sm:$0xff]
    %v434 = vld [vmem:[%s8] sm:$0x3]
    %v436 = vlaneseq
    %v437 = vshrl.u32 %v436, 7
    %v438 = vsub.s32 0, %v437
    %v439 = vrot.slane %v434, %v438
    %v440 = vlaneseq
    %v441 = vshrl.u32 %v440, 7
    %v442 = vsub.s32 1, %v441
    %v443 = vrot.slane %v434, %v442
    %446 = vmatprep.subr.mxu0 %v403
    %447 = vmatpush1.msra.mxu0 %v402
    %448 = vmatprep.subr.mxu0 %v405
    %449 = vmatpush1.msra.mxu0 %v404
    %450 = vmatprep.subr.mxu0 %v407
    %451 = vmatpush1.msra.mxu0 %v406
    %452 = vmatprep.subr.mxu0 %v409
    %453 = vmatpush1.msra.mxu0 %v408
    %454 = vmatprep.subr.mxu0 %v411
    %455 = vmatpush1.msra.mxu0 %v410
    %456 = vmatprep.subr.mxu0 %v413
    %457 = vmatpush1.msra.mxu0 %v412
    %458 = vmatprep.subr.mxu0 %v415
    %459 = vmatpush1.msra.mxu0 %v414
    %460 = vmatprep.subr.mxu0 %v417
    %461 = vmatpush1.msra.mxu0 %v416
    %462 = vmatprep.subr.mxu0 %v419
    %463 = vmatpush1.msra.mxu0 %v418
    %464 = vmatprep.subr.mxu0 %v421
    %465 = vmatpush1.msra.mxu0 %v420
    %466 = vmatprep.subr.mxu0 %v423
    %467 = vmatpush1.msra.mxu0 %v422
    %468 = vmatprep.subr.mxu0 %v425
    %469 = vmatpush1.msra.mxu0 %v424
    %470 = vmatprep.subr.mxu0 %v427
    %471 = vmatpush1.msra.mxu0 %v426
    %472 = vmatprep.subr.mxu0 %v429
    %473 = vmatpush1.msra.mxu0 %v428
    %474 = vmatprep.subr.mxu0 %v431
    %475 = vmatpush1.msra.mxu0 %v430
    %476 = vmatprep.subr.mxu0 %v433
    %477 = vmatpush1.msra.mxu0 %v432
    %478 = vmatprep.subr.mxu0 0.0
    %479 = vmatpush1.msra.mxu0 0.0
    %480 = vmatprep.subr.mxu0 0.0
    %481 = vmatpush1.msra.mxu0 0.0
    %482 = vmatprep.subr.mxu0 0.0
    %483 = vmatpush1.msra.mxu0 0.0
    %484 = vmatprep.subr.mxu0 0.0
    %485 = vmatpush1.msra.mxu0 0.0
    %486 = vmatprep.subr.mxu0 0.0
    %487 = vmatpush1.msra.mxu0 0.0
    %488 = vmatprep.subr.mxu0 0.0
    %489 = vmatpush1.msra.mxu0 0.0
    %490 = vmatprep.subr.mxu0 0.0
    %491 = vmatpush1.msra.mxu0 0.0
    %492 = vmatprep.subr.mxu0 0.0
    %493 = vmatpush1.msra.mxu0 0.0
    %494 = vmatprep.subr.mxu0 0.0
    %495 = vmatpush1.msra.mxu0 0.0
    %496 = vmatprep.subr.mxu0 0.0
    %497 = vmatpush1.msra.mxu0 0.0
    %498 = vmatprep.subr.mxu0 0.0
    %499 = vmatpush1.msra.mxu0 0.0
    %500 = vmatprep.subr.mxu0 0.0
    %501 = vmatpush1.msra.mxu0 0.0
    %502 = vmatprep.subr.mxu0 0.0
    %503 = vmatpush1.msra.mxu0 0.0
    %504 = vmatprep.subr.mxu0 0.0
    %505 = vmatpush1.msra.mxu0 0.0
    %506 = vmatprep.subr.mxu0 0.0
    %507 = vmatpush1.msra.mxu0 0.0
    %508 = vmatprep.subr.mxu0 0.0
    %509 = vmatpush1.msra.mxu0 0.0
    %510 = vmatprep.mubr.f32.mxu0 0.0
    %511 = vmatmul.mubr.f32.gmra.mrb[0].mxu0 %v401
    %v512 = vpop.f32.mrb[0].mxu0
    %v513 = vadd.f32 %v439, %v512
    %v514 = vpop.f32.mrb[0].mxu0
    %v515 = vadd.f32 %v443, %v514
    %516 = vdwg.mxu0
    %v517 = vxor.u32 %v513, 2147483648
    %v518 = vxor.u32 %v515, 2147483648
    %v519 = vmul.f32 %v517, 1.442695
    %v520 = vpow.pop %v519
    %v521 = vmul.f32 %v518, 1.442695
    %v522 = vpow.pop %v521
    %v523 = vadd.f32 %v520, 1.0
    %v524 = vadd.f32 %v522, 1.0
    %v525 = vrcp.pop %v523
    %v526 = vmul.f32 1.0, %v525
    %v527 = vrcp.pop %v524
    %v528 = vmul.f32 1.0, %v527
    %529 = vst [vmem:[#allocation11] sm:$0xff] %v526
    %530 = vst [vmem:[#allocation11 + $0x8] sm:$0xff] %v528
    // Predicated region
    $region58: #{tpu_custom_call.1} parent=1 // pred_check
      _
    $region59: #{tpu_custom_call.1} parent=1 // pred_check_branch
      %532 = sbr.rel (0) target = $region61
    $region60: #{tpu_custom_call.1} parent=1 // pred_region
      %s534 = ssub.s32 256, 256
      %535 = vsyncadd [#allocation4], %s534
      %s537 = sshll.u32 [#allocation11], 4
      %s538 = int_to_ptr.vmem [resolvable:$true] %s537
      %540 = dma.vmem_to_hbm [thread:$0]  %s538, 256, %s9, [#allocation4]
    $region61: #{tpu_custom_call.1} parent=1 // pred_fallthru
      _
    // Predicated region
    $region62: #{tpu_custom_call.1} parent=1 // pred_check
      _
    $region63: #{tpu_custom_call.1} parent=1 // pred_check_branch
      %542 = sbr.rel (0) target = $region65
    $region64: #{tpu_custom_call.1} parent=1 // pred_region
      %s544 = ssub.s32 128, 128
      %545 = vsyncadd [#allocation13], %s544
      %s547 = sshll.u32 [#allocation12], 4
      %s548 = int_to_ptr.vmem [resolvable:$true] %s547
      %550 = dma.vmem_to_hbm [thread:$0]  %s548, 128, %s10, [#allocation13]
    $region65: #{tpu_custom_call.1} parent=1 // pred_fallthru
      _
    // Predicated region
    $region66: #{tpu_custom_call.1} parent=1 // pred_check
      _
    $region67: #{tpu_custom_call.1} parent=1 // pred_check_branch
      %552 = sbr.rel (0) target = $region69
    $region68: #{tpu_custom_call.1} parent=1 // pred_region
      %553 = dma.done [#allocation4], 256
    $region69: #{tpu_custom_call.1} parent=1 // pred_fallthru
      _
    // Predicated region
    $region70: #{tpu_custom_call.1} parent=1 // pred_check
      _
    $region71: #{tpu_custom_call.1} parent=1 // pred_check_branch
      %555 = sbr.rel (0) target = $region73
    $region72: #{tpu_custom_call.1} parent=1 // pred_region
      %556 = dma.done [#allocation13], 128
    $region73: #{tpu_custom_call.1} parent=1 // pred_fallthru
      _
    %557 = vsyncpa [#allocation3], 1
    %558 = vsyncpa [#allocation6], 1
    %559 = vsyncpa [#allocation9], 1
    %560 = vsyncpa [#allocation4], 1
    %561 = vsyncpa [#allocation13], 1

</llo_original>
